<compile_context>
chip_gen: v6e
topology: v6e:2x2x1
jax: 0.10.0
libtpu: 0.0.40
codegen_flags: <defaults>
</compile_context>

<pallas_src>
import functools

import jax
import jax.numpy as jnp
from jax.experimental import pallas as pl
from jax.experimental.pallas import tpu as pltpu

_NEG_FILL = -1e30  # padded logit columns -> exp() underflows to exactly 0


def _round_up(x, m):
    return ((x + m - 1) // m) * m


def _pad_dim(d):
    # Fill the 256x256 MXU (v6e/v7x) only when the real dim is already large;
    # never inflate small (HBM-bound) dims past the 128-lane minimum.
    return _round_up(d, 256) if d >= 256 else _round_up(d, 128)


def _mlp_logsoftmax_kernel(x_ref, w1_ref, b1_ref, w2_ref, b2_ref,
                           w3_ref, b3_ref, o_ref, *, n_tokens):
    """One row-tile: 3x Linear (bf16 MXU, f32 acc) + ReLU + log_softmax."""
    # f32 -> bf16 cast done here on the VPU (hidden under the MXU) instead of
    # as a standalone XLA pass over the activations in HBM.
    x = x_ref[...].astype(w1_ref.dtype)                               # (tm, F) bf16

    h1 = jnp.dot(x, w1_ref[...], preferred_element_type=jnp.float32) + b1_ref[...]
    h1 = jnp.maximum(h1, 0.0).astype(w2_ref.dtype)                    # back to bf16

    h2 = jnp.dot(h1, w2_ref[...], preferred_element_type=jnp.float32) + b2_ref[...]
    h2 = jnp.maximum(h2, 0.0).astype(w3_ref.dtype)

    logits = jnp.dot(h2, w3_ref[...], preferred_element_type=jnp.float32) + b3_ref[...]

    # Numerically stable log_softmax over the padded token axis (padded lanes
    # carry bias -1e30 -> exp underflows to 0, so the lse is exact).
    m = jnp.max(logits, axis=-1, keepdims=True)
    shifted = logits - m
    lse = jnp.log(jnp.sum(jnp.exp(shifted), axis=-1, keepdims=True))
    logp = shifted - lse                                              # (tm, V_pad) f32

    # Write only the real vocab columns (masked vst when n_tokens % 128 != 0);
    # this removes the post-kernel slice-copy over the whole output tensor.
    o_ref[...] = logp[:, :n_tokens].astype(o_ref.dtype)


def prepare_params(params):
    """One-time pad/cast of the weights (hoisted out of the jitted forward).

    params: dict with w1 (F,H), b1 (1,H), w2 (H,H), b2 (1,H), w3 (H,V), b3 (1,V)
            stored (in, out), i.e. transposed vs PyTorch's (out, in).
    Returns (prepared_param_dict, n_tokens).
    """
    F, H = params["w1"].shape
    V = params["w3"].shape[1]
    H_pad, V_pad = _pad_dim(H), _pad_dim(V)
    bf16 = jnp.bfloat16

    prepared = {
        # Zero-padded hidden lanes: ReLU(0*x + 0) = 0 -> contribute nothing.
        "w1": jnp.pad(params["w1"], ((0, 0), (0, H_pad - H))).astype(bf16),
        "b1": jnp.pad(params["b1"].astype(jnp.float32), ((0, 0), (0, H_pad - H))),
        "w2": jnp.pad(params["w2"], ((0, H_pad - H), (0, H_pad - H))).astype(bf16),
        "b2": jnp.pad(params["b2"].astype(jnp.float32), ((0, 0), (0, H_pad - H))),
        "w3": jnp.pad(params["w3"], ((0, H_pad - H), (0, V_pad - V))).astype(bf16),
        # Padded vocab columns get a huge negative bias -> exp underflows to 0,
        # so the log-sum-exp over V_pad lanes equals the one over the real V lanes.
        "b3": jnp.pad(params["b3"].astype(jnp.float32), ((0, 0), (0, V_pad - V)),
                      constant_values=_NEG_FILL),
    }
    prepared = jax.device_put(prepared)
    return prepared, V


@functools.partial(jax.jit, static_argnames=("n_tokens", "tile_m"))
def baseline_model_forward(spectrogram, spectrogram_length, prepared,
                           n_tokens, tile_m=512):
    """
    Args:
        spectrogram: (B, T, n_feats) float32
        spectrogram_length: (B,) int32
        prepared: output of prepare_params() (padded bf16 weights / f32 biases)
        n_tokens: true vocabulary size (static)
        tile_m: row tile size (positive multiple of 16, static)
    Returns:
        {"log_probs": (B, T, n_tokens) f32, "log_probs_length": (B,)}
    """
    B, T, F = spectrogram.shape
    H_pad = prepared["w1"].shape[1]
    V_pad = prepared["w3"].shape[1]
    V = n_tokens

    assert tile_m > 0 and tile_m % 16 == 0, "tile_m must be a positive multiple of 16"

    M = B * T
    # Contiguous reshape only — no copy, no dtype change; the f32 tiles are
    # streamed by the kernel DMA and cast to bf16 in-kernel.
    x2d = spectrogram.reshape(M, F)

    # Cap the row tile so the grid has >= 4 steps when M allows -> the
    # "parallel" axis can actually be sharded across v7x's two TensorCores.
    tm = min(tile_m, max(16, _round_up(pl.cdiv(M, 4), 16)))
    grid = (pl.cdiv(M, tm),)

    # Explicit VMEM budget: double-buffered x/out tiles + (worst-case double
    # buffered) resident weights + f32 intermediates, with headroom. Kept under
    # v7x's 64 MiB physical VMEM; raises v5e's 16 MiB default scoped limit.
    weight_bytes = ((F * H_pad + H_pad * H_pad + H_pad * V_pad) * 2
                    + (2 * H_pad + V_pad) * 4)
    stream_bytes = 2 * tm * (F + V) * 4             # double-buffered x-in / logp-out
    interm_bytes = 4 * tm * max(H_pad, V_pad) * 4   # f32 intermediates headroom
    vmem_need = 2 * weight_bytes + stream_bytes + interm_bytes
    vmem_limit = int(min(max(2 * vmem_need, 32 << 20), 64 << 20))

    cost = pl.CostEstimate(
        flops=2 * M * (F * H_pad + H_pad * H_pad + H_pad * V_pad),
        transcendentals=M * (V_pad + 1),
        bytes_accessed=(M * F * 4          # f32 activations in
                        + M * V * 4        # f32 log-probs out (true vocab only)
                        + weight_bytes),   # resident weights/biases
    )

    kernel = functools.partial(_mlp_logsoftmax_kernel, n_tokens=V)

    out2d = pl.pallas_call(
        kernel,
        out_shape=jax.ShapeDtypeStruct((M, V), jnp.float32),
        grid_spec=pltpu.PrefetchScalarGridSpec(
            num_scalar_prefetch=0,
            grid=grid,
            in_specs=[
                pl.BlockSpec((tm, F), lambda i: (i, 0)),        # x tile (streamed, f32)
                pl.BlockSpec((F, H_pad), lambda i: (0, 0)),     # w1 (resident, bf16)
                pl.BlockSpec((1, H_pad), lambda i: (0, 0)),     # b1 (f32)
                pl.BlockSpec((H_pad, H_pad), lambda i: (0, 0)), # w2
                pl.BlockSpec((1, H_pad), lambda i: (0, 0)),     # b2
                pl.BlockSpec((H_pad, V_pad), lambda i: (0, 0)), # w3
                pl.BlockSpec((1, V_pad), lambda i: (0, 0)),     # b3
            ],
            out_specs=pl.BlockSpec((tm, V), lambda i: (i, 0)),  # true-V writeback
        ),
        compiler_params=pltpu.CompilerParams(
            dimension_semantics=("parallel",),   # row tiles are independent
            vmem_limit_bytes=vmem_limit,
        ),
        cost_estimate=cost,
    )(x2d, prepared["w1"], prepared["b1"], prepared["w2"], prepared["b2"],
      prepared["w3"], prepared["b3"])

    log_probs = out2d.reshape(B, T, V)
    # Time dimension is not reduced by the MLP; lengths pass through unchanged.
    return {"log_probs": log_probs, "log_probs_length": spectrogram_length}


def init_params(key, n_feats, n_tokens, fc_hidden):
    """Deterministic synthetic init (PyTorch-style uniform fan-in bounds)."""
    ks = jax.random.split(key, 6)

    def linear(kw, kb, fan_in, fan_out):
        bound = 1.0 / jnp.sqrt(jnp.float32(fan_in))
        # Stored as (in, out), i.e. transpose of torch's (out, in).
        w = jax.random.uniform(kw, (fan_in, fan_out), jnp.float32, -bound, bound)
        b = jax.random.uniform(kb, (1, fan_out), jnp.float32, -bound, bound)
        return w, b

    w1, b1 = linear(ks[0], ks[1], n_feats, fc_hidden)
    w2, b2 = linear(ks[2], ks[3], fc_hidden, fc_hidden)
    w3, b3 = linear(ks[4], ks[5], fc_hidden, n_tokens)
    return {"w1": w1, "b1": b1, "w2": w2, "b2": b2, "w3": w3, "b3": b3}


if __name__ == "__main__":
    # Small shapes consistent with the module's forward contract.
    # M = B*T = 200 is NOT a multiple of the row tile, so the ragged last
    # block path is exercised; n_tokens=32 exercises the true-V masked store.
    B, T = 2, 100
    n_feats, fc_hidden, n_tokens = 128, 64, 32

    key = jax.random.PRNGKey(0)
    k_x, k_p = jax.random.split(key)

    spectrogram = jax.random.normal(k_x, (B, T, n_feats), jnp.float32)
    spectrogram_length = jnp.full((B,), T, dtype=jnp.int32)
    params = init_params(k_p, n_feats, n_tokens, fc_hidden)

    prepared, vocab = prepare_params(params)   # one-time pad/cast (outside jit)

    out = baseline_model_forward(spectrogram, spectrogram_length, prepared,
                                 n_tokens=vocab, tile_m=64)
    jax.block_until_ready(out)

    # Pure-JAX reference mirroring the kernel numerics (bf16 operands, f32 acc).
    def ref(x):
        bf = jnp.bfloat16
        h = jnp.dot(x.reshape(-1, n_feats).astype(bf), params["w1"].astype(bf),
                    preferred_element_type=jnp.float32) + params["b1"]
        h = jnp.maximum(h, 0.0)
        h = jnp.dot(h.astype(bf), params["w2"].astype(bf),
                    preferred_element_type=jnp.float32) + params["b2"]
        h = jnp.maximum(h, 0.0)
        logits = jnp.dot(h.astype(bf), params["w3"].astype(bf),
                         preferred_element_type=jnp.float32) + params["b3"]
        return jax.nn.log_softmax(logits, axis=-1).reshape(B, T, n_tokens)

    expected = ref(spectrogram)
    assert out["log_probs"].shape == (B, T, n_tokens)
    assert out["log_probs"].dtype == jnp.float32
    assert out["log_probs_length"].shape == (B,)
    max_err = float(jnp.max(jnp.abs(out["log_probs"] - expected)))
    assert jnp.allclose(out["log_probs"], expected, atol=1e-3, rtol=1e-3), max_err
    assert jnp.array_equal(out["log_probs_length"], spectrogram_length)

    print("KERNEL_OK")
</pallas_src>

<mosaic_0001>
module attributes {stable_mosaic.version = 11 : i64} {
  func.func @_mlp_logsoftmax_kernel(%arg0: i32, %arg1: memref<64x128xf32, #tpu.memory_space<vmem>>, %arg2: memref<128x128xbf16, #tpu.memory_space<vmem>>, %arg3: memref<1x128xf32, #tpu.memory_space<vmem>>, %arg4: memref<128x128xbf16, #tpu.memory_space<vmem>>, %arg5: memref<1x128xf32, #tpu.memory_space<vmem>>, %arg6: memref<128x128xbf16, #tpu.memory_space<vmem>>, %arg7: memref<1x128xf32, #tpu.memory_space<vmem>>, %arg8: memref<64x32xf32, #tpu.memory_space<vmem>>) attributes {dimension_semantics = [#tpu.dimension_semantics<parallel>], iteration_bounds = array<i64: 4>, scalar_prefetch = 0 : i64, scratch_operands = 0 : i64, tpu.core_type = #tpu.core_type<tc>, window_params = [{transform_indices = @transform_0, window_bounds = array<i64: 64, 128>}, {pipeline_mode = #tpu.pipeline_mode<synchronous>, transform_indices = @transform_1, window_bounds = array<i64: 128, 128>}, {pipeline_mode = #tpu.pipeline_mode<synchronous>, transform_indices = @transform_2, window_bounds = array<i64: 1, 128>}, {pipeline_mode = #tpu.pipeline_mode<synchronous>, transform_indices = @transform_3, window_bounds = array<i64: 128, 128>}, {pipeline_mode = #tpu.pipeline_mode<synchronous>, transform_indices = @transform_4, window_bounds = array<i64: 1, 128>}, {pipeline_mode = #tpu.pipeline_mode<synchronous>, transform_indices = @transform_5, window_bounds = array<i64: 128, 128>}, {pipeline_mode = #tpu.pipeline_mode<synchronous>, transform_indices = @transform_6, window_bounds = array<i64: 1, 128>}, {transform_indices = @transform_7, window_bounds = array<i64: 64, 32>}]} {
    %c0 = arith.constant 0 : index
    %c0_0 = arith.constant 0 : index
    %0 = vector.load %arg1[%c0, %c0_0] : memref<64x128xf32, #tpu.memory_space<vmem>>, vector<64x128xf32>
    %1 = arith.truncf %0 : vector<64x128xf32> to vector<64x128xbf16>
    %c0_1 = arith.constant 0 : index
    %c0_2 = arith.constant 0 : index
    %2 = vector.load %arg2[%c0_1, %c0_2] : memref<128x128xbf16, #tpu.memory_space<vmem>>, vector<128x128xbf16>
    %cst = arith.constant dense<0.000000e+00> : vector<64x128xf32>
    %3 = tpu.matmul %1, %2, %cst {dimension_numbers = #tpu.dot_dimension_numbers<[1], [0], [0], [1], [0, 0, 1, 1], [], []>} : vector<64x128xbf16>, vector<128x128xbf16>, vector<64x128xf32> -> vector<64x128xf32>
    %c0_3 = arith.constant 0 : index
    %c0_4 = arith.constant 0 : index
    %4 = vector.load %arg3[%c0_3, %c0_4] : memref<1x128xf32, #tpu.memory_space<vmem>>, vector<1x128xf32>
    %5 = vector.broadcast %4 : vector<1x128xf32> to vector<64x128xf32>
    %6 = arith.addf %3, %5 : vector<64x128xf32>
    %cst_5 = arith.constant 0.000000e+00 : f32
    %7 = vector.broadcast %cst_5 : f32 to vector<64x128xf32>
    %8 = arith.maximumf %6, %7 : vector<64x128xf32>
    %9 = arith.truncf %8 : vector<64x128xf32> to vector<64x128xbf16>
    %c0_6 = arith.constant 0 : index
    %c0_7 = arith.constant 0 : index
    %10 = vector.load %arg4[%c0_6, %c0_7] : memref<128x128xbf16, #tpu.memory_space<vmem>>, vector<128x128xbf16>
    %cst_8 = arith.constant dense<0.000000e+00> : vector<64x128xf32>
    %11 = tpu.matmul %9, %10, %cst_8 {dimension_numbers = #tpu.dot_dimension_numbers<[1], [0], [0], [1], [0, 0, 1, 1], [], []>} : vector<64x128xbf16>, vector<128x128xbf16>, vector<64x128xf32> -> vector<64x128xf32>
    %c0_9 = arith.constant 0 : index
    %c0_10 = arith.constant 0 : index
    %12 = vector.load %arg5[%c0_9, %c0_10] : memref<1x128xf32, #tpu.memory_space<vmem>>, vector<1x128xf32>
    %13 = vector.broadcast %12 : vector<1x128xf32> to vector<64x128xf32>
    %14 = arith.addf %11, %13 : vector<64x128xf32>
    %cst_11 = arith.constant 0.000000e+00 : f32
    %15 = vector.broadcast %cst_11 : f32 to vector<64x128xf32>
    %16 = arith.maximumf %14, %15 : vector<64x128xf32>
    %17 = arith.truncf %16 : vector<64x128xf32> to vector<64x128xbf16>
    %c0_12 = arith.constant 0 : index
    %c0_13 = arith.constant 0 : index
    %18 = vector.load %arg6[%c0_12, %c0_13] : memref<128x128xbf16, #tpu.memory_space<vmem>>, vector<128x128xbf16>
    %cst_14 = arith.constant dense<0.000000e+00> : vector<64x128xf32>
    %19 = tpu.matmul %17, %18, %cst_14 {dimension_numbers = #tpu.dot_dimension_numbers<[1], [0], [0], [1], [0, 0, 1, 1], [], []>} : vector<64x128xbf16>, vector<128x128xbf16>, vector<64x128xf32> -> vector<64x128xf32>
    %c0_15 = arith.constant 0 : index
    %c0_16 = arith.constant 0 : index
    %20 = vector.load %arg7[%c0_15, %c0_16] : memref<1x128xf32, #tpu.memory_space<vmem>>, vector<1x128xf32>
    %21 = vector.broadcast %20 : vector<1x128xf32> to vector<64x128xf32>
    %22 = arith.addf %19, %21 : vector<64x128xf32>
    %cst_17 = arith.constant dense<0xFF800000> : vector<64xf32>
    %23 = vector.multi_reduction <maximumf>, %22, %cst_17 [1] : vector<64x128xf32> to vector<64xf32>
    %24 = vector.shape_cast %23 : vector<64xf32> to vector<64x1xf32>
    %25 = vector.broadcast %24 : vector<64x1xf32> to vector<64x128xf32>
    %26 = arith.subf %22, %25 : vector<64x128xf32>
    %27 = math.exp %26 : vector<64x128xf32>
    %cst_18 = arith.constant dense<0.000000e+00> : vector<64xf32>
    %28 = vector.multi_reduction <add>, %27, %cst_18 [1] : vector<64x128xf32> to vector<64xf32>
    %29 = vector.shape_cast %28 : vector<64xf32> to vector<64x1xf32>
    %30 = math.log %29 : vector<64x1xf32>
    %31 = vector.broadcast %30 : vector<64x1xf32> to vector<64x128xf32>
    %32 = arith.subf %26, %31 : vector<64x128xf32>
    %33 = vector.extract_strided_slice %32 {offsets = [0, 0], sizes = [64, 32], strides = [1, 1]} : vector<64x128xf32> to vector<64x32xf32>
    %c0_19 = arith.constant 0 : index
    %c0_20 = arith.constant 0 : index
    %34 = vector.load %arg8[%c0_19, %c0_20] : memref<64x32xf32, #tpu.memory_space<vmem>>, vector<64x32xf32>
    tpu.vector_store %arg8[%c0_19, %c0_20], %33 {strides = array<i32>} : memref<64x32xf32, #tpu.memory_space<vmem>>, vector<64x32xf32>,
    return
  }
  func.func @transform_0(%arg0: i32) -> (i32, i32) {
    %c0_i32 = arith.constant 0 : i32
    %c0_i32_0 = arith.constant 0 : i32
    return %arg0, %c0_i32 : i32, i32
  }
  func.func @transform_1(%arg0: i32) -> (i32, i32) {
    %c0_i32 = arith.constant 0 : i32
    %c0_i32_0 = arith.constant 0 : i32
    %c0_i32_1 = arith.constant 0 : i32
    return %c0_i32, %c0_i32_0 : i32, i32
  }
  func.func @transform_2(%arg0: i32) -> (i32, i32) {
    %c0_i32 = arith.constant 0 : i32
    %c0_i32_0 = arith.constant 0 : i32
    %c0_i32_1 = arith.constant 0 : i32
    return %c0_i32, %c0_i32_0 : i32, i32
  }
  func.func @transform_3(%arg0: i32) -> (i32, i32) {
    %c0_i32 = arith.constant 0 : i32
    %c0_i32_0 = arith.constant 0 : i32
    %c0_i32_1 = arith.constant 0 : i32
    return %c0_i32, %c0_i32_0 : i32, i32
  }
  func.func @transform_4(%arg0: i32) -> (i32, i32) {
    %c0_i32 = arith.constant 0 : i32
    %c0_i32_0 = arith.constant 0 : i32
    %c0_i32_1 = arith.constant 0 : i32
    return %c0_i32, %c0_i32_0 : i32, i32
  }
  func.func @transform_5(%arg0: i32) -> (i32, i32) {
    %c0_i32 = arith.constant 0 : i32
    %c0_i32_0 = arith.constant 0 : i32
    %c0_i32_1 = arith.constant 0 : i32
    return %c0_i32, %c0_i32_0 : i32, i32
  }
  func.func @transform_6(%arg0: i32) -> (i32, i32) {
    %c0_i32 = arith.constant 0 : i32
    %c0_i32_0 = arith.constant 0 : i32
    %c0_i32_1 = arith.constant 0 : i32
    return %c0_i32, %c0_i32_0 : i32, i32
  }
  func.func @transform_7(%arg0: i32) -> (i32, i32) {
    %c0_i32 = arith.constant 0 : i32
    %c0_i32_0 = arith.constant 0 : i32
    return %arg0, %c0_i32 : i32, i32
  }
}

</mosaic_0001>

<llo_original>
// kernel: baseline_model_forward.1
$region0: #{baseline_model_forward.1}
  #allocation0 [shape = 'u32[]', space=smem, size = 0x4, offset = 0x4, fixed_abs, tag = 'smem constant byte address 0x4 - core index']
  #allocation1 [shape = 'u32[144,128]{1,0:T(1,128)}', space=vmem, size = 0x12000, scoped, tag = 'internal scratch']
  %s0 = inlined_call_operand.vmem [shape: f32[200,128], index: 0, kind: input, shape index: {}]
  %s1 = inlined_call_operand.vmem [shape: bf16[128,128], index: 1, kind: input, shape index: {}]
  %s2 = inlined_call_operand.vmem [shape: f32[1,128], index: 2, kind: input, shape index: {}]
  %s3 = inlined_call_operand.vmem [shape: bf16[128,128], index: 3, kind: input, shape index: {}]
  %s4 = inlined_call_operand.vmem [shape: f32[1,128], index: 4, kind: input, shape index: {}]
  %s5 = inlined_call_operand.vmem [shape: bf16[128,128], index: 5, kind: input, shape index: {}]
  %s6 = inlined_call_operand.vmem [shape: f32[1,128], index: 6, kind: input, shape index: {}]
  %s7 = inlined_call_operand.vmem [shape: f32[200,32], index: 7, kind: output, shape index: {}]
  %s8 = sld [smem:[#allocation0]]
  $region109: #{baseline_model_forward.1} parent=0
    _
  %s10 = ssub.s32 1, %s8
  %s11 = scalar_select 0, %s10, %s8
  $region1: #{baseline_model_forward.1} parent=0
    #allocation2 [shape = 'u8[65536]{0}', space=vmem, size = 0x10000, scoped, tag = 'output window, operand 0']
    loop: start=0, step=1, limit=6
    $region2: #{baseline_model_forward.1} parent=1 // loop_pre_header
      _
    $region3: #{baseline_model_forward.1} parent=1 // loop_header
      %s13 = sphi 0, %s17
      %p14 = scmp.ge.s32.totalorder %s13, 6
      %s23 = sphi 0, %s25
      %s26 = sphi 0, %s23
      %s27 = sphi 0, %s26
      %s43 = sphi 0, %s27
      %s47 = sphi 0, %s47
      %s49 = sphi 0, %s47
      %s50 = sphi 0, %s49
      %s64 = sphi 0, %s50
      %s68 = sphi 0, %s68
      %s70 = sphi 0, %s68
      %s71 = sphi 0, %s70
      %s85 = sphi 0, %s71
      %s89 = sphi 0, %s89
      %s91 = sphi 0, %s89
      %s92 = sphi 0, %s91
      %s106 = sphi 0, %s92
      %s110 = sphi 0, %s110
      %s112 = sphi 0, %s110
      %s113 = sphi 0, %s112
      %s127 = sphi 0, %s113
      %s131 = sphi 0, %s131
      %s133 = sphi 0, %s131
      %s134 = sphi 0, %s133
      %s148 = sphi 0, %s134
      %s152 = sphi 0, %s152
      %s154 = sphi 0, %s152
      %s155 = sphi 0, %s154
      %s169 = sphi 0, %s155
      %s175 = sphi 0, %s177
      %s178 = sphi 0, %s175
      %s179 = sphi 0, %s178
      %s195 = sphi 0, %s179
    $region4: #{baseline_model_forward.1} parent=1 // loop_header_branch
      %16 = sbr.rel (%p14) target = $region8
    $region5: #{baseline_model_forward.1} parent=1 // loop_body
      %s18 = ssub.s32 %s13, 1
      %s19 = ssub.s32 %s13, 2
      %s20 = sadd.s32 %s13, 1
      %s21 = ssub.s32 %s13, %s20
      %p22 = scmp.eq.s32.totalorder %s21, 0
      %s24 = sadd.s32 %s23, 1
      %s25 = scalar_select %p22, %s23, %s24
      %p28 = pneg %p22
      %p29 = scmp.eq.s32.totalorder %s13, 3
      %p30 = por %p28, %p29
      %p31 = scmp.ne.s32.totalorder %s23, %s26
      %p32 = scmp.eq.s32.totalorder %s13, 0
      %p33 = por %p31, %p32
      %p34 = scmp.ne.s32.totalorder %s23, %s26
      %p35 = scmp.eq.s32.totalorder %s18, 3
      %p36 = por %p34, %p35
      %p37 = scmp.ne.s32.totalorder %s26, %s27
      %p38 = scmp.eq.s32.totalorder %s18, 0
      %p39 = por %p37, %p38
      %p40 = scmp.ne.s32.totalorder %s26, %s27
      %p41 = scmp.eq.s32.totalorder %s19, 3
      %p42 = por %p40, %p41
      %p44 = scmp.ne.s32.totalorder %s27, %s43
      %p45 = scmp.eq.s32.totalorder %s19, 0
      %p46 = por %p44, %p45
      %s48 = sadd.s32 %s47, 1
      %p51 = scmp.eq.s32.totalorder %s13, 3
      %p52 = scmp.ne.s32.totalorder %s47, %s49
      %p53 = scmp.eq.s32.totalorder %s13, 0
      %p54 = por %p52, %p53
      %p55 = scmp.ne.s32.totalorder %s47, %s49
      %p56 = scmp.eq.s32.totalorder %s18, 3
      %p57 = por %p55, %p56
      %p58 = scmp.ne.s32.totalorder %s49, %s50
      %p59 = scmp.eq.s32.totalorder %s18, 0
      %p60 = por %p58, %p59
      %p61 = scmp.ne.s32.totalorder %s49, %s50
      %p62 = scmp.eq.s32.totalorder %s19, 3
      %p63 = por %p61, %p62
      %p65 = scmp.ne.s32.totalorder %s50, %s64
      %p66 = scmp.eq.s32.totalorder %s19, 0
      %p67 = por %p65, %p66
      %s69 = sadd.s32 %s68, 1
      %p72 = scmp.eq.s32.totalorder %s13, 3
      %p73 = scmp.ne.s32.totalorder %s68, %s70
      %p74 = scmp.eq.s32.totalorder %s13, 0
      %p75 = por %p73, %p74
      %p76 = scmp.ne.s32.totalorder %s68, %s70
      %p77 = scmp.eq.s32.totalorder %s18, 3
      %p78 = por %p76, %p77
      %p79 = scmp.ne.s32.totalorder %s70, %s71
      %p80 = scmp.eq.s32.totalorder %s18, 0
      %p81 = por %p79, %p80
      %p82 = scmp.ne.s32.totalorder %s70, %s71
      %p83 = scmp.eq.s32.totalorder %s19, 3
      %p84 = por %p82, %p83
      %p86 = scmp.ne.s32.totalorder %s71, %s85
      %p87 = scmp.eq.s32.totalorder %s19, 0
      %p88 = por %p86, %p87
      %s90 = sadd.s32 %s89, 1
      %p93 = scmp.eq.s32.totalorder %s13, 3
      %p94 = scmp.ne.s32.totalorder %s89, %s91
      %p95 = scmp.eq.s32.totalorder %s13, 0
      %p96 = por %p94, %p95
      %p97 = scmp.ne.s32.totalorder %s89, %s91
      %p98 = scmp.eq.s32.totalorder %s18, 3
      %p99 = por %p97, %p98
      %p100 = scmp.ne.s32.totalorder %s91, %s92
      %p101 = scmp.eq.s32.totalorder %s18, 0
      %p102 = por %p100, %p101
      %p103 = scmp.ne.s32.totalorder %s91, %s92
      %p104 = scmp.eq.s32.totalorder %s19, 3
      %p105 = por %p103, %p104
      %p107 = scmp.ne.s32.totalorder %s92, %s106
      %p108 = scmp.eq.s32.totalorder %s19, 0
      %p109 = por %p107, %p108
      %s111 = sadd.s32 %s110, 1
      %p114 = scmp.eq.s32.totalorder %s13, 3
      %p115 = scmp.ne.s32.totalorder %s110, %s112
      %p116 = scmp.eq.s32.totalorder %s13, 0
      %p117 = por %p115, %p116
      %p118 = scmp.ne.s32.totalorder %s110, %s112
      %p119 = scmp.eq.s32.totalorder %s18, 3
      %p120 = por %p118, %p119
      %p121 = scmp.ne.s32.totalorder %s112, %s113
      %p122 = scmp.eq.s32.totalorder %s18, 0
      %p123 = por %p121, %p122
      %p124 = scmp.ne.s32.totalorder %s112, %s113
      %p125 = scmp.eq.s32.totalorder %s19, 3
      %p126 = por %p124, %p125
      %p128 = scmp.ne.s32.totalorder %s113, %s127
      %p129 = scmp.eq.s32.totalorder %s19, 0
      %p130 = por %p128, %p129
      %s132 = sadd.s32 %s131, 1
      %p135 = scmp.eq.s32.totalorder %s13, 3
      %p136 = scmp.ne.s32.totalorder %s131, %s133
      %p137 = scmp.eq.s32.totalorder %s13, 0
      %p138 = por %p136, %p137
      %p139 = scmp.ne.s32.totalorder %s131, %s133
      %p140 = scmp.eq.s32.totalorder %s18, 3
      %p141 = por %p139, %p140
      %p142 = scmp.ne.s32.totalorder %s133, %s134
      %p143 = scmp.eq.s32.totalorder %s18, 0
      %p144 = por %p142, %p143
      %p145 = scmp.ne.s32.totalorder %s133, %s134
      %p146 = scmp.eq.s32.totalorder %s19, 3
      %p147 = por %p145, %p146
      %p149 = scmp.ne.s32.totalorder %s134, %s148
      %p150 = scmp.eq.s32.totalorder %s19, 0
      %p151 = por %p149, %p150
      %s153 = sadd.s32 %s152, 1
      %p156 = scmp.eq.s32.totalorder %s13, 3
      %p157 = scmp.ne.s32.totalorder %s152, %s154
      %p158 = scmp.eq.s32.totalorder %s13, 0
      %p159 = por %p157, %p158
      %p160 = scmp.ne.s32.totalorder %s152, %s154
      %p161 = scmp.eq.s32.totalorder %s18, 3
      %p162 = por %p160, %p161
      %p163 = scmp.ne.s32.totalorder %s154, %s155
      %p164 = scmp.eq.s32.totalorder %s18, 0
      %p165 = por %p163, %p164
      %p166 = scmp.ne.s32.totalorder %s154, %s155
      %p167 = scmp.eq.s32.totalorder %s19, 3
      %p168 = por %p166, %p167
      %p170 = scmp.ne.s32.totalorder %s155, %s169
      %p171 = scmp.eq.s32.totalorder %s19, 0
      %p172 = por %p170, %p171
      %s173 = ssub.s32 %s13, %s20
      %p174 = scmp.eq.s32.totalorder %s173, 0
      %s176 = sadd.s32 %s175, 1
      %s177 = scalar_select %p174, %s175, %s176
      %p180 = pneg %p174
      %p181 = scmp.eq.s32.totalorder %s13, 3
      %p182 = por %p180, %p181
      %p183 = scmp.ne.s32.totalorder %s175, %s178
      %p184 = scmp.eq.s32.totalorder %s13, 0
      %p185 = por %p183, %p184
      %p186 = scmp.ne.s32.totalorder %s175, %s178
      %p187 = scmp.eq.s32.totalorder %s18, 3
      %p188 = por %p186, %p187
      %p189 = scmp.ne.s32.totalorder %s178, %s179
      %p190 = scmp.eq.s32.totalorder %s18, 0
      %p191 = por %p189, %p190
      %p192 = scmp.ne.s32.totalorder %s178, %s179
      %p193 = scmp.eq.s32.totalorder %s19, 3
      %p194 = por %p192, %p193
      %p196 = scmp.ne.s32.totalorder %s179, %s195
      %p197 = scmp.eq.s32.totalorder %s19, 0
      %p198 = por %p196, %p197
      %p199 = scmp.le.s32.totalorder 1, %s13
      %p200 = scmp.lt.s32.totalorder %s13, 5
      %p201 = pnand %p199, %p200
      %p202 = pneg %p201
      // Predicated region
      $region9: #{baseline_model_forward.1} parent=5 // pred_check
        _
      $region10: #{baseline_model_forward.1} parent=5 // pred_check_branch
        %204 = sbr.rel (%p201) target = $region12
      $region11: #{baseline_model_forward.1} parent=5 // pred_region
        %s205 = ssub.s32 %s13, 1
        // Predicated region
        $region13: #{baseline_model_forward.1} parent=11 // pred_check
          %p206 = pneg %p60
        $region14: #{baseline_model_forward.1} parent=11 // pred_check_branch
          %208 = sbr.rel (%p206) target = $region16
        $region15: #{baseline_model_forward.1} parent=11 // pred_region
          _
        $region16: #{baseline_model_forward.1} parent=11 // pred_fallthru
          _
        // Predicated region
        $region17: #{baseline_model_forward.1} parent=11 // pred_check
          %p209 = pneg %p81
        $region18: #{baseline_model_forward.1} parent=11 // pred_check_branch
          %211 = sbr.rel (%p209) target = $region20
        $region19: #{baseline_model_forward.1} parent=11 // pred_region
          _
        $region20: #{baseline_model_forward.1} parent=11 // pred_fallthru
          _
        // Predicated region
        $region21: #{baseline_model_forward.1} parent=11 // pred_check
          %p212 = pneg %p102
        $region22: #{baseline_model_forward.1} parent=11 // pred_check_branch
          %214 = sbr.rel (%p212) target = $region24
        $region23: #{baseline_model_forward.1} parent=11 // pred_region
          _
        $region24: #{baseline_model_forward.1} parent=11 // pred_fallthru
          _
        // Predicated region
        $region25: #{baseline_model_forward.1} parent=11 // pred_check
          %p215 = pneg %p123
        $region26: #{baseline_model_forward.1} parent=11 // pred_check_branch
          %217 = sbr.rel (%p215) target = $region28
        $region27: #{baseline_model_forward.1} parent=11 // pred_region
          _
        $region28: #{baseline_model_forward.1} parent=11 // pred_fallthru
          _
        // Predicated region
        $region29: #{baseline_model_forward.1} parent=11 // pred_check
          %p218 = pneg %p144
        $region30: #{baseline_model_forward.1} parent=11 // pred_check_branch
          %220 = sbr.rel (%p218) target = $region32
        $region31: #{baseline_model_forward.1} parent=11 // pred_region
          _
        $region32: #{baseline_model_forward.1} parent=11 // pred_fallthru
          _
        // Predicated region
        $region33: #{baseline_model_forward.1} parent=11 // pred_check
          %p221 = pneg %p165
        $region34: #{baseline_model_forward.1} parent=11 // pred_check_branch
          %223 = sbr.rel (%p221) target = $region36
        $region35: #{baseline_model_forward.1} parent=11 // pred_region
          _
        $region36: #{baseline_model_forward.1} parent=11 // pred_fallthru
          _
      $region12: #{baseline_model_forward.1} parent=5 // pred_fallthru
        _
      %p224 = scmp.lt.s32.totalorder %s13, 4
      // Predicated region
      $region37: #{baseline_model_forward.1} parent=5 // pred_check
        %p225 = pneg %p224
      $region38: #{baseline_model_forward.1} parent=5 // pred_check_branch
        %227 = sbr.rel (%p225) target = $region40
      $region39: #{baseline_model_forward.1} parent=5 // pred_region
        // Predicated region
        $region41: #{baseline_model_forward.1} parent=39 // pred_check
          %p228 = pneg %p33
        $region42: #{baseline_model_forward.1} parent=39 // pred_check_branch
          %230 = sbr.rel (%p228) target = $region44
        $region43: #{baseline_model_forward.1} parent=39 // pred_region
          %s231 = smul.u32 8, %s13
          %s232 = ssub.s32 25, %s231
          %p233 = scmp.lt.s32.totalorder %s232, 8
          %s234 = scalar_select %p233, %s232, 8
          %s235 = smul.u32 128, %s234
          %p236 = scmp.lt.s32.totalorder %s231, 24
          %s237 = scalar_select %p236, %s231, 24
          %s238 = smul.addr %s237, 8
          %s239 = scalar_lea.vmem %s0, %s238
          %s240 = smul.u32 8, %s13
          %s241 = ssub.s32 25, %s240
          %p242 = scmp.lt.s32.totalorder %s241, 8
          %s243 = scalar_select %p242, %s241, 8
          %s244 = smul.u32 128, %s243
        $region44: #{baseline_model_forward.1} parent=39 // pred_fallthru
          _
      $region40: #{baseline_model_forward.1} parent=5 // pred_fallthru
        _
      %p245 = scmp.le.s32.totalorder 1, %s13
      %p246 = scmp.lt.s32.totalorder %s13, 5
      %p247 = pnand %p245, %p246
      %p248 = pneg %p247
      // Predicated region
      $region45: #{baseline_model_forward.1} parent=5 // pred_check
        _
      $region46: #{baseline_model_forward.1} parent=5 // pred_check_branch
        %250 = sbr.rel (%p247) target = $region48
      $region47: #{baseline_model_forward.1} parent=5 // pred_region
        %s251 = ssub.s32 %s13, 1
        %s252 = smul.u32 8, %s18
        %s253 = ssub.s32 25, %s252
        %p254 = scmp.lt.s32.totalorder %s253, 8
        %s255 = scalar_select %p254, %s253, 8
        %s256 = smul.u32 128, %s255
        %p257 = scmp.lt.s32.totalorder %s252, 24
        %s258 = scalar_select %p257, %s252, 24
        %s259 = smul.addr %s258, 8
        %s260 = scalar_lea.vmem %s0, %s259
        %p261 = pneg %p39
        %p262 = pneg %p36
        %p263 = pneg %p60
        %p264 = pneg %p57
        %p265 = pneg %p81
        %p266 = pneg %p78
        %p267 = pneg %p102
        %p268 = pneg %p99
        %p269 = pneg %p123
        %p270 = pneg %p120
        %p271 = pneg %p144
        %p272 = pneg %p141
        %p273 = pneg %p165
        %p274 = pneg %p162
        %p275 = pneg %p191
        %p276 = pneg %p188
        %s277 = sand.u32 %s178, 1
        %s278 = sand.u32 %s178, 1
        %s279 = smul.addr %s278, 64
        %s280 = scalar_lea.vmem [#allocation2], %s279
        %s281 = smul.u32 8, %s18
        %s282 = ssub.s32 25, %s281
        %p283 = scmp.lt.s32.totalorder %s282, 8
        %s284 = scalar_select %p283, %s282, 8
        %s285 = smul.u32 128, %s284
        %p286 = scmp.lt.s32.totalorder %s281, 24
        %s287 = scalar_select %p286, %s281, 24
        %s288 = smul.addr %s287, 8
        %s289 = scalar_lea.vmem %s0, %s288
        %s290 = smul.u32 8, %s18
        %s291 = ssub.s32 25, %s290
        %p292 = scmp.lt.s32.totalorder %s291, 8
        %s293 = scalar_select %p292, %s291, 8
        %s294 = smul.u32 128, %s293
        %s295 = smul.u32 8, %s18
        %s296 = ssub.s32 25, %s295
        %p297 = scmp.lt.s32.totalorder %s296, 8
        %s298 = scalar_select %p297, %s296, 8
        %s299 = smul.u32 128, %s298
        %v301 = vld [vmem:[%s289] sm:$0xff]
        %v302 = vld [vmem:[%s289 + $0x8] sm:$0xff]
        %v303 = vld [vmem:[%s289 + $0x10] sm:$0xff]
        %v304 = vld [vmem:[%s289 + $0x18] sm:$0xff]
        %v305 = vld [vmem:[%s289 + $0x20] sm:$0xff]
        %v306 = vld [vmem:[%s289 + $0x28] sm:$0xff]
        %v307 = vld [vmem:[%s289 + $0x30] sm:$0xff]
        %v308 = vld [vmem:[%s289 + $0x38] sm:$0xff]
        %v309 = vpack.c.bf16 %v302, %v301
        %v310 = vpack.c.bf16 %v304, %v303
        %v311 = vpack.c.bf16 %v306, %v305
        %v312 = vpack.c.bf16 %v308, %v307
        %v313 = vld [vmem:[%s1] sm:$0xf]
        %v314 = vld [vmem:[%s1 + $0x4] sm:$0xf]
        %v315 = vld [vmem:[%s1 + $0x8] sm:$0xf]
        %v316 = vld [vmem:[%s1 + $0xc] sm:$0xf]
        %v317 = vld [vmem:[%s1 + $0x10] sm:$0xf]
        %v318 = vld [vmem:[%s1 + $0x14] sm:$0xf]
        %v319 = vld [vmem:[%s1 + $0x18] sm:$0xf]
        %v320 = vld [vmem:[%s1 + $0x1c] sm:$0xf]
        %v321 = vld [vmem:[%s1 + $0x20] sm:$0xf]
        %v322 = vld [vmem:[%s1 + $0x24] sm:$0xf]
        %v323 = vld [vmem:[%s1 + $0x28] sm:$0xf]
        %v324 = vld [vmem:[%s1 + $0x2c] sm:$0xf]
        %v325 = vld [vmem:[%s1 + $0x30] sm:$0xf]
        %v326 = vld [vmem:[%s1 + $0x34] sm:$0xf]
        %v327 = vld [vmem:[%s1 + $0x38] sm:$0xf]
        %v328 = vld [vmem:[%s1 + $0x3c] sm:$0xf]
        %v329 = vld [vmem:[%s2] sm:$0x1]
        %v331 = vlaneseq
        %v332 = vshrl.u32 %v331, 7
        %v333 = vsub.s32 0, %v332
        %v334 = vrot.slane %v329, %v333
        %v352 = vunpack.c.l.b16 %v313
        %v353 = vunpack.c.l.b16 %v314
        %v354 = vunpack.c.l.b16 %v315
        %v355 = vunpack.c.l.b16 %v316
        %v356 = vunpack.c.l.b16 %v317
        %v357 = vunpack.c.l.b16 %v318
        %v358 = vunpack.c.l.b16 %v319
        %v359 = vunpack.c.l.b16 %v320
        %v360 = vunpack.c.l.b16 %v321
        %v361 = vunpack.c.l.b16 %v322
        %v362 = vunpack.c.l.b16 %v323
        %v363 = vunpack.c.l.b16 %v324
        %v364 = vunpack.c.l.b16 %v325
        %v365 = vunpack.c.l.b16 %v326
        %v366 = vunpack.c.l.b16 %v327
        %v367 = vunpack.c.l.b16 %v328
        %v368 = vpack.c.b16 %v353, %v352
        %v369 = vpack.c.b16 %v355, %v354
        %v370 = vpack.c.b16 %v357, %v356
        %v371 = vpack.c.b16 %v359, %v358
        %v372 = vpack.c.b16 %v361, %v360
        %v373 = vpack.c.b16 %v363, %v362
        %v374 = vpack.c.b16 %v365, %v364
        %v375 = vpack.c.b16 %v367, %v366
        %384 = vmatprep.subr.bf16.mxu0 0
        %385 = vmatpush1.bf16.msra.mxu0 %v375
        %386 = vmatprep.subr.bf16.mxu0 0
        %387 = vmatpush1.bf16.msra.mxu0 %v374
        %388 = vmatprep.subr.bf16.mxu0 0
        %389 = vmatpush1.bf16.msra.mxu0 %v373
        %390 = vmatprep.subr.bf16.mxu0 0
        %391 = vmatpush1.bf16.msra.mxu0 %v372
        %392 = vmatprep.subr.bf16.mxu0 0
        %393 = vmatpush1.bf16.msra.mxu0 %v371
        %394 = vmatprep.subr.bf16.mxu0 0
        %395 = vmatpush1.bf16.msra.mxu0 %v370
        %396 = vmatprep.subr.bf16.mxu0 0
        %397 = vmatpush1.bf16.msra.mxu0 %v369
        %398 = vmatprep.subr.bf16.mxu0 0
        %399 = vmatpush1.bf16.msra.mxu0 %v368
        %400 = vmatprep.subr.bf16.mxu0 0
        %401 = vmatpush2.bf16.msra.mxu0 0
        %402 = vmatprep.subr.bf16.mxu0 0
        %403 = vmatpush2.bf16.msra.mxu0 0
        %404 = vmatprep.subr.bf16.mxu0 0
        %405 = vmatpush2.bf16.msra.mxu0 0
        %406 = vmatprep.subr.bf16.mxu0 0
        %407 = vmatpush2.bf16.msra.mxu0 0
        %408 = vmatprep.subr.bf16.mxu0 0
        %409 = vmatpush2.bf16.msra.mxu0 0
        %410 = vmatprep.subr.bf16.mxu0 0
        %411 = vmatpush2.bf16.msra.mxu0 0
        %412 = vmatprep.subr.bf16.mxu0 0
        %413 = vmatpush2.bf16.msra.mxu0 0
        %414 = vmatprep.subr.bf16.mxu0 0
        %415 = vmatpush2.bf16.msra.mxu0 0
        %416 = vmatprep.mubr.bf16.mxu0 0
        %417 = vmatmul.mubr.bf16.gmra.mxu0 %v309
        %v418 = vpop.f32.mrf.mxu0
        %v419 = vadd.f32 %v334, %v418
        %v420 = vpop.f32.mrf.mxu0
        %v421 = vpop.f32.mrf.mxu0
        %v422 = vadd.f32 %v334, %v421
        %v423 = vpop.f32.mrf.mxu0
        %424 = vmatprep.mubr.bf16.mxu0 0
        %425 = vmatmul.mubr.bf16.gmra.mxu0 %v310
        %v426 = vpop.f32.mrf.mxu0
        %v427 = vadd.f32 %v334, %v426
        %v428 = vpop.f32.mrf.mxu0
        %v429 = vpop.f32.mrf.mxu0
        %v430 = vadd.f32 %v334, %v429
        %v431 = vpop.f32.mrf.mxu0
        %432 = vmatprep.mubr.bf16.mxu0 0
        %433 = vmatmul.mubr.bf16.gmra.mxu0 %v311
        %v434 = vpop.f32.mrf.mxu0
        %v435 = vadd.f32 %v334, %v434
        %v436 = vpop.f32.mrf.mxu0
        %v437 = vpop.f32.mrf.mxu0
        %v438 = vadd.f32 %v334, %v437
        %v439 = vpop.f32.mrf.mxu0
        %440 = vmatprep.mubr.bf16.mxu0 0
        %441 = vmatmul.mubr.bf16.gmra.mxu0 %v312
        %v442 = vpop.f32.mrf.mxu0
        %v443 = vadd.f32 %v334, %v442
        %v444 = vpop.f32.mrf.mxu0
        %v445 = vpop.f32.mrf.mxu0
        %v446 = vadd.f32 %v334, %v445
        %v447 = vpop.f32.mrf.mxu0
        %448 = vdwg.mxu0
        %v449 = vmax.f32 %v419, 0.0
        %v450 = vmax.f32 %v422, 0.0
        %v451 = vmax.f32 %v427, 0.0
        %v452 = vmax.f32 %v430, 0.0
        %v453 = vmax.f32 %v435, 0.0
        %v454 = vmax.f32 %v438, 0.0
        %v455 = vmax.f32 %v443, 0.0
        %v456 = vmax.f32 %v446, 0.0
        %v457 = vpack.c.bf16 %v450, %v449
        %v458 = vpack.c.bf16 %v452, %v451
        %v459 = vpack.c.bf16 %v454, %v453
        %v460 = vpack.c.bf16 %v456, %v455
        %v461 = vld [vmem:[%s3] sm:$0xf]
        %v462 = vld [vmem:[%s3 + $0x4] sm:$0xf]
        %v463 = vld [vmem:[%s3 + $0x8] sm:$0xf]
        %v464 = vld [vmem:[%s3 + $0xc] sm:$0xf]
        %v465 = vld [vmem:[%s3 + $0x10] sm:$0xf]
        %v466 = vld [vmem:[%s3 + $0x14] sm:$0xf]
        %v467 = vld [vmem:[%s3 + $0x18] sm:$0xf]
        %v468 = vld [vmem:[%s3 + $0x1c] sm:$0xf]
        %v469 = vld [vmem:[%s3 + $0x20] sm:$0xf]
        %v470 = vld [vmem:[%s3 + $0x24] sm:$0xf]
        %v471 = vld [vmem:[%s3 + $0x28] sm:$0xf]
        %v472 = vld [vmem:[%s3 + $0x2c] sm:$0xf]
        %v473 = vld [vmem:[%s3 + $0x30] sm:$0xf]
        %v474 = vld [vmem:[%s3 + $0x34] sm:$0xf]
        %v475 = vld [vmem:[%s3 + $0x38] sm:$0xf]
        %v476 = vld [vmem:[%s3 + $0x3c] sm:$0xf]
        %v477 = vld [vmem:[%s4] sm:$0x1]
        %v479 = vlaneseq
        %v480 = vshrl.u32 %v479, 7
        %v481 = vsub.s32 0, %v480
        %v482 = vrot.slane %v477, %v481
        %v500 = vunpack.c.l.b16 %v461
        %v501 = vunpack.c.l.b16 %v462
        %v502 = vunpack.c.l.b16 %v463
        %v503 = vunpack.c.l.b16 %v464
        %v504 = vunpack.c.l.b16 %v465
        %v505 = vunpack.c.l.b16 %v466
        %v506 = vunpack.c.l.b16 %v467
        %v507 = vunpack.c.l.b16 %v468
        %v508 = vunpack.c.l.b16 %v469
        %v509 = vunpack.c.l.b16 %v470
        %v510 = vunpack.c.l.b16 %v471
        %v511 = vunpack.c.l.b16 %v472
        %v512 = vunpack.c.l.b16 %v473
        %v513 = vunpack.c.l.b16 %v474
        %v514 = vunpack.c.l.b16 %v475
        %v515 = vunpack.c.l.b16 %v476
        %v516 = vpack.c.b16 %v501, %v500
        %v517 = vpack.c.b16 %v503, %v502
        %v518 = vpack.c.b16 %v505, %v504
        %v519 = vpack.c.b16 %v507, %v506
        %v520 = vpack.c.b16 %v509, %v508
        %v521 = vpack.c.b16 %v511, %v510
        %v522 = vpack.c.b16 %v513, %v512
        %v523 = vpack.c.b16 %v515, %v514
        %532 = vmatprep.subr.bf16.mxu0 0
        %533 = vmatpush1.bf16.msra.mxu0 %v523
        %534 = vmatprep.subr.bf16.mxu0 0
        %535 = vmatpush1.bf16.msra.mxu0 %v522
        %536 = vmatprep.subr.bf16.mxu0 0
        %537 = vmatpush1.bf16.msra.mxu0 %v521
        %538 = vmatprep.subr.bf16.mxu0 0
        %539 = vmatpush1.bf16.msra.mxu0 %v520
        %540 = vmatprep.subr.bf16.mxu0 0
        %541 = vmatpush1.bf16.msra.mxu0 %v519
        %542 = vmatprep.subr.bf16.mxu0 0
        %543 = vmatpush1.bf16.msra.mxu0 %v518
        %544 = vmatprep.subr.bf16.mxu0 0
        %545 = vmatpush1.bf16.msra.mxu0 %v517
        %546 = vmatprep.subr.bf16.mxu0 0
        %547 = vmatpush1.bf16.msra.mxu0 %v516
        %548 = vmatprep.subr.bf16.mxu0 0
        %549 = vmatpush2.bf16.msra.mxu0 0
        %550 = vmatprep.subr.bf16.mxu0 0
        %551 = vmatpush2.bf16.msra.mxu0 0
        %552 = vmatprep.subr.bf16.mxu0 0
        %553 = vmatpush2.bf16.msra.mxu0 0
        %554 = vmatprep.subr.bf16.mxu0 0
        %555 = vmatpush2.bf16.msra.mxu0 0
        %556 = vmatprep.subr.bf16.mxu0 0
        %557 = vmatpush2.bf16.msra.mxu0 0
        %558 = vmatprep.subr.bf16.mxu0 0
        %559 = vmatpush2.bf16.msra.mxu0 0
        %560 = vmatprep.subr.bf16.mxu0 0
        %561 = vmatpush2.bf16.msra.mxu0 0
        %562 = vmatprep.subr.bf16.mxu0 0
        %563 = vmatpush2.bf16.msra.mxu0 0
        %564 = vmatprep.mubr.bf16.mxu0 0
        %565 = vmatmul.mubr.bf16.gmra.mxu0 %v457
        %v566 = vpop.f32.mrf.mxu0
        %v567 = vadd.f32 %v482, %v566
        %v568 = vpop.f32.mrf.mxu0
        %v569 = vpop.f32.mrf.mxu0
        %v570 = vadd.f32 %v482, %v569
        %v571 = vpop.f32.mrf.mxu0
        %572 = vmatprep.mubr.bf16.mxu0 0
        %573 = vmatmul.mubr.bf16.gmra.mxu0 %v458
        %v574 = vpop.f32.mrf.mxu0
        %v575 = vadd.f32 %v482, %v574
        %v576 = vpop.f32.mrf.mxu0
        %v577 = vpop.f32.mrf.mxu0
        %v578 = vadd.f32 %v482, %v577
        %v579 = vpop.f32.mrf.mxu0
        %580 = vmatprep.mubr.bf16.mxu0 0
        %581 = vmatmul.mubr.bf16.gmra.mxu0 %v459
        %v582 = vpop.f32.mrf.mxu0
        %v583 = vadd.f32 %v482, %v582
        %v584 = vpop.f32.mrf.mxu0
        %v585 = vpop.f32.mrf.mxu0
        %v586 = vadd.f32 %v482, %v585
        %v587 = vpop.f32.mrf.mxu0
        %588 = vmatprep.mubr.bf16.mxu0 0
        %589 = vmatmul.mubr.bf16.gmra.mxu0 %v460
        %v590 = vpop.f32.mrf.mxu0
        %v591 = vadd.f32 %v482, %v590
        %v592 = vpop.f32.mrf.mxu0
        %v593 = vpop.f32.mrf.mxu0
        %v594 = vadd.f32 %v482, %v593
        %v595 = vpop.f32.mrf.mxu0
        %596 = vdwg.mxu0
        %v597 = vmax.f32 %v567, 0.0
        %v598 = vmax.f32 %v570, 0.0
        %v599 = vmax.f32 %v575, 0.0
        %v600 = vmax.f32 %v578, 0.0
        %v601 = vmax.f32 %v583, 0.0
        %v602 = vmax.f32 %v586, 0.0
        %v603 = vmax.f32 %v591, 0.0
        %v604 = vmax.f32 %v594, 0.0
        %v605 = vpack.c.bf16 %v598, %v597
        %v606 = vpack.c.bf16 %v600, %v599
        %v607 = vpack.c.bf16 %v602, %v601
        %v608 = vpack.c.bf16 %v604, %v603
        %v609 = vld [vmem:[%s5] sm:$0xf]
        %v610 = vld [vmem:[%s5 + $0x4] sm:$0xf]
        %v611 = vld [vmem:[%s5 + $0x8] sm:$0xf]
        %v612 = vld [vmem:[%s5 + $0xc] sm:$0xf]
        %v613 = vld [vmem:[%s5 + $0x10] sm:$0xf]
        %v614 = vld [vmem:[%s5 + $0x14] sm:$0xf]
        %v615 = vld [vmem:[%s5 + $0x18] sm:$0xf]
        %v616 = vld [vmem:[%s5 + $0x1c] sm:$0xf]
        %v617 = vld [vmem:[%s5 + $0x20] sm:$0xf]
        %v618 = vld [vmem:[%s5 + $0x24] sm:$0xf]
        %v619 = vld [vmem:[%s5 + $0x28] sm:$0xf]
        %v620 = vld [vmem:[%s5 + $0x2c] sm:$0xf]
        %v621 = vld [vmem:[%s5 + $0x30] sm:$0xf]
        %v622 = vld [vmem:[%s5 + $0x34] sm:$0xf]
        %v623 = vld [vmem:[%s5 + $0x38] sm:$0xf]
        %v624 = vld [vmem:[%s5 + $0x3c] sm:$0xf]
        %v625 = vld [vmem:[%s6] sm:$0x1]
        %v627 = vlaneseq
        %v628 = vshrl.u32 %v627, 7
        %v629 = vsub.s32 0, %v628
        %v630 = vrot.slane %v625, %v629
        %v648 = vunpack.c.l.b16 %v609
        %v649 = vunpack.c.l.b16 %v610
        %v650 = vunpack.c.l.b16 %v611
        %v651 = vunpack.c.l.b16 %v612
        %v652 = vunpack.c.l.b16 %v613
        %v653 = vunpack.c.l.b16 %v614
        %v654 = vunpack.c.l.b16 %v615
        %v655 = vunpack.c.l.b16 %v616
        %v656 = vunpack.c.l.b16 %v617
        %v657 = vunpack.c.l.b16 %v618
        %v658 = vunpack.c.l.b16 %v619
        %v659 = vunpack.c.l.b16 %v620
        %v660 = vunpack.c.l.b16 %v621
        %v661 = vunpack.c.l.b16 %v622
        %v662 = vunpack.c.l.b16 %v623
        %v663 = vunpack.c.l.b16 %v624
        %v664 = vpack.c.b16 %v649, %v648
        %v665 = vpack.c.b16 %v651, %v650
        %v666 = vpack.c.b16 %v653, %v652
        %v667 = vpack.c.b16 %v655, %v654
        %v668 = vpack.c.b16 %v657, %v656
        %v669 = vpack.c.b16 %v659, %v658
        %v670 = vpack.c.b16 %v661, %v660
        %v671 = vpack.c.b16 %v663, %v662
        %680 = vmatprep.subr.bf16.mxu0 0
        %681 = vmatpush1.bf16.msra.mxu0 %v671
        %682 = vmatprep.subr.bf16.mxu0 0
        %683 = vmatpush1.bf16.msra.mxu0 %v670
        %684 = vmatprep.subr.bf16.mxu0 0
        %685 = vmatpush1.bf16.msra.mxu0 %v669
        %686 = vmatprep.subr.bf16.mxu0 0
        %687 = vmatpush1.bf16.msra.mxu0 %v668
        %688 = vmatprep.subr.bf16.mxu0 0
        %689 = vmatpush1.bf16.msra.mxu0 %v667
        %690 = vmatprep.subr.bf16.mxu0 0
        %691 = vmatpush1.bf16.msra.mxu0 %v666
        %692 = vmatprep.subr.bf16.mxu0 0
        %693 = vmatpush1.bf16.msra.mxu0 %v665
        %694 = vmatprep.subr.bf16.mxu0 0
        %695 = vmatpush1.bf16.msra.mxu0 %v664
        %696 = vmatprep.subr.bf16.mxu0 0
        %697 = vmatpush2.bf16.msra.mxu0 0
        %698 = vmatprep.subr.bf16.mxu0 0
        %699 = vmatpush2.bf16.msra.mxu0 0
        %700 = vmatprep.subr.bf16.mxu0 0
        %701 = vmatpush2.bf16.msra.mxu0 0
        %702 = vmatprep.subr.bf16.mxu0 0
        %703 = vmatpush2.bf16.msra.mxu0 0
        %704 = vmatprep.subr.bf16.mxu0 0
        %705 = vmatpush2.bf16.msra.mxu0 0
        %706 = vmatprep.subr.bf16.mxu0 0
        %707 = vmatpush2.bf16.msra.mxu0 0
        %708 = vmatprep.subr.bf16.mxu0 0
        %709 = vmatpush2.bf16.msra.mxu0 0
        %710 = vmatprep.subr.bf16.mxu0 0
        %711 = vmatpush2.bf16.msra.mxu0 0
        %712 = vmatprep.mubr.bf16.mxu0 0
        %713 = vmatmul.mubr.bf16.gmra.mxu0 %v605
        %v714 = vpop.f32.mrf.mxu0
        %v715 = vadd.f32 %v630, %v714
        %v716 = vpop.f32.mrf.mxu0
        %v717 = vpop.f32.mrf.mxu0
        %v718 = vadd.f32 %v630, %v717
        %v719 = vpop.f32.mrf.mxu0
        %720 = vmatprep.mubr.bf16.mxu0 0
        %721 = vmatmul.mubr.bf16.gmra.mxu0 %v606
        %v722 = vpop.f32.mrf.mxu0
        %v723 = vadd.f32 %v630, %v722
        %v724 = vpop.f32.mrf.mxu0
        %v725 = vpop.f32.mrf.mxu0
        %v726 = vadd.f32 %v630, %v725
        %v727 = vpop.f32.mrf.mxu0
        %728 = vmatprep.mubr.bf16.mxu0 0
        %729 = vmatmul.mubr.bf16.gmra.mxu0 %v607
        %v730 = vpop.f32.mrf.mxu0
        %v731 = vadd.f32 %v630, %v730
        %v732 = vpop.f32.mrf.mxu0
        %v733 = vpop.f32.mrf.mxu0
        %v734 = vadd.f32 %v630, %v733
        %v735 = vpop.f32.mrf.mxu0
        %736 = vmatprep.mubr.bf16.mxu0 0
        %737 = vmatmul.mubr.bf16.gmra.mxu0 %v608
        %v738 = vpop.f32.mrf.mxu0
        %v739 = vadd.f32 %v630, %v738
        %v740 = vpop.f32.mrf.mxu0
        %v741 = vpop.f32.mrf.mxu0
        %v742 = vadd.f32 %v630, %v741
        %v743 = vpop.f32.mrf.mxu0
        %744 = vdwg.mxu0
        %745 = vmax.xlane.f32.xlu0 %v715
        %v746 = vpop.xlane.xlu0 %745
        %747 = vmax.xlane.f32.xlu0 %v718
        %v748 = vpop.xlane.xlu0 %747
        %749 = vmax.xlane.f32.xlu0 %v723
        %v750 = vpop.xlane.xlu0 %749
        %751 = vmax.xlane.f32.xlu0 %v726
        %v752 = vpop.xlane.xlu0 %751
        %753 = vmax.xlane.f32.xlu0 %v731
        %v754 = vpop.xlane.xlu0 %753
        %755 = vmax.xlane.f32.xlu0 %v734
        %v756 = vpop.xlane.xlu0 %755
        %757 = vmax.xlane.f32.xlu0 %v739
        %v758 = vpop.xlane.xlu0 %757
        %759 = vmax.xlane.f32.xlu0 %v742
        %v760 = vpop.xlane.xlu0 %759
        %v761 = vsub.f32 %v715, %v746
        %v762 = vsub.f32 %v718, %v748
        %v763 = vsub.f32 %v723, %v750
        %v764 = vsub.f32 %v726, %v752
        %v765 = vsub.f32 %v731, %v754
        %v766 = vsub.f32 %v734, %v756
        %v767 = vsub.f32 %v739, %v758
        %v768 = vsub.f32 %v742, %v760
        %v769 = vmul.f32 %v761, 1.442695
        %v770 = vpow.pop %v769
        %v771 = vmul.f32 %v762, 1.442695
        %v772 = vpow.pop %v771
        %v773 = vmul.f32 %v763, 1.442695
        %v774 = vpow.pop %v773
        %v775 = vmul.f32 %v764, 1.442695
        %v776 = vpow.pop %v775
        %v777 = vmul.f32 %v765, 1.442695
        %v778 = vpow.pop %v777
        %v779 = vmul.f32 %v766, 1.442695
        %v780 = vpow.pop %v779
        %v781 = vmul.f32 %v767, 1.442695
        %v782 = vpow.pop %v781
        %v783 = vmul.f32 %v768, 1.442695
        %v784 = vpow.pop %v783
        %785 = vadd.xlane.f32.xlu0 %v770
        %v786 = vpop.xlane.xlu0 %785
        %787 = vadd.xlane.f32.xlu0 %v772
        %v788 = vpop.xlane.xlu0 %787
        %789 = vadd.xlane.f32.xlu0 %v774
        %v790 = vpop.xlane.xlu0 %789
        %791 = vadd.xlane.f32.xlu0 %v776
        %v792 = vpop.xlane.xlu0 %791
        %793 = vadd.xlane.f32.xlu0 %v778
        %v794 = vpop.xlane.xlu0 %793
        %795 = vadd.xlane.f32.xlu0 %v780
        %v796 = vpop.xlane.xlu0 %795
        %797 = vadd.xlane.f32.xlu0 %v782
        %v798 = vpop.xlane.xlu0 %797
        %799 = vadd.xlane.f32.xlu0 %v784
        %v800 = vpop.xlane.xlu0 %799
        %v801 = vlog2.pop %v786
        %v802 = vmul.f32 %v801, 0.6931472
        %v803 = vlog2.pop %v788
        %v804 = vmul.f32 %v803, 0.6931472
        %v805 = vlog2.pop %v790
        %v806 = vmul.f32 %v805, 0.6931472
        %v807 = vlog2.pop %v792
        %v808 = vmul.f32 %v807, 0.6931472
        %v809 = vlog2.pop %v794
        %v810 = vmul.f32 %v809, 0.6931472
        %v811 = vlog2.pop %v796
        %v812 = vmul.f32 %v811, 0.6931472
        %v813 = vlog2.pop %v798
        %v814 = vmul.f32 %v813, 0.6931472
        %v815 = vlog2.pop %v800
        %v816 = vmul.f32 %v815, 0.6931472
        %v817 = vsub.f32 %v761, %v802
        %v818 = vsub.f32 %v762, %v804
        %v819 = vsub.f32 %v763, %v806
        %v820 = vsub.f32 %v764, %v808
        %v821 = vsub.f32 %v765, %v810
        %v822 = vsub.f32 %v766, %v812
        %v823 = vsub.f32 %v767, %v814
        %v824 = vsub.f32 %v768, %v816
        %vm825 = vcmask 261120
        %826 = vst.msk [vmem:[%s280] sm:$0xff] %vm825, %v817
        %827 = vst.msk [vmem:[%s280 + $0x8] sm:$0xff] %vm825, %v818
        %828 = vst.msk [vmem:[%s280 + $0x10] sm:$0xff] %vm825, %v819
        %829 = vst.msk [vmem:[%s280 + $0x18] sm:$0xff] %vm825, %v820
        %830 = vst.msk [vmem:[%s280 + $0x20] sm:$0xff] %vm825, %v821
        %831 = vst.msk [vmem:[%s280 + $0x28] sm:$0xff] %vm825, %v822
        %832 = vst.msk [vmem:[%s280 + $0x30] sm:$0xff] %vm825, %v823
        %833 = vst.msk [vmem:[%s280 + $0x38] sm:$0xff] %vm825, %v824
        %s834 = sand.u32 %s178, 1
        %s835 = sand.u32 %s178, 1
        %s836 = smul.addr %s835, 64
        %s837 = scalar_lea.vmem [#allocation2], %s836
        // Predicated region
        $region49: #{baseline_model_forward.1} parent=47 // pred_check
          %p838 = pneg %p188
        $region50: #{baseline_model_forward.1} parent=47 // pred_check_branch
          %840 = sbr.rel (%p838) target = $region52
        $region51: #{baseline_model_forward.1} parent=47 // pred_region
          %s841 = smul.u32 8, %s18
          %s842 = ssub.s32 25, %s841
          %p843 = scmp.lt.s32.totalorder %s842, 8
          %s844 = scalar_select %p843, %s842, 8
          %s845 = smul.u32 128, %s844
          %p846 = scmp.ne.s32.totalorder 0, %s845
          %s847 = smul.addr %s841, 8
          %s848 = scalar_lea.vmem %s7, %s847
          // Predicated region
          $region53: #{baseline_model_forward.1} parent=51 // pred_check
            %p849 = pneg %p846
          $region54: #{baseline_model_forward.1} parent=51 // pred_check_branch
            %851 = sbr.rel (%p849) target = $region56
          $region55: #{baseline_model_forward.1} parent=51 // pred_region
            // Predicated region
            $region57: #{baseline_model_forward.1} parent=55 // pred_check
              _
            $region58: #{baseline_model_forward.1} parent=55 // pred_check_branch
              %853 = sbr.rel (0) target = $region60
            $region59: #{baseline_model_forward.1} parent=55 // pred_region
              // Predicated region
              $region79: #{baseline_model_forward.1} parent=59 // pred_check
                _
              $region80: #{baseline_model_forward.1} parent=59 // pred_check_branch
                %917 = sbr.rel (0) target = $region82
              $region81: #{baseline_model_forward.1} parent=59 // pred_region
                %s918 = sshrl.u32 %s844, 3
                // While loop
                $region83: #{baseline_model_forward.1} parent=81 // loop_pre_header
                  _
                $region84: #{baseline_model_forward.1} parent=81 // loop_header
                  %s920 = sphi 0, %s922
                  %p921 = scmp.ge.s32.totalorder %s920, %s918
                  %s925 = sphi 0, %s946
                  %s926 = sphi %s837, %s949
                  %s927 = sphi %s848, %s950
                $region85: #{baseline_model_forward.1} parent=81 // loop_header_branch
                  %924 = sbr.rel (%p921) target = $region89
                $region86: #{baseline_model_forward.1} parent=81 // loop_body
                  %v928 = vld [vmem:[%s926] sm:$0xff]
                  %929 = vst [vmem:[%s927] sm:$0xff] %v928
                  %v930 = vld [vmem:[%s926 + $0x8] sm:$0xff]
                  %931 = vst [vmem:[%s927 + $0x8] sm:$0xff] %v930
                  %v932 = vld [vmem:[%s926 + $0x10] sm:$0xff]
                  %933 = vst [vmem:[%s927 + $0x10] sm:$0xff] %v932
                  %v934 = vld [vmem:[%s926 + $0x18] sm:$0xff]
                  %935 = vst [vmem:[%s927 + $0x18] sm:$0xff] %v934
                  %v936 = vld [vmem:[%s926 + $0x20] sm:$0xff]
                  %937 = vst [vmem:[%s927 + $0x20] sm:$0xff] %v936
                  %v938 = vld [vmem:[%s926 + $0x28] sm:$0xff]
                  %939 = vst [vmem:[%s927 + $0x28] sm:$0xff] %v938
                  %v940 = vld [vmem:[%s926 + $0x30] sm:$0xff]
                  %941 = vst [vmem:[%s927 + $0x30] sm:$0xff] %v940
                  %v942 = vld [vmem:[%s926 + $0x38] sm:$0xff]
                  %943 = vst [vmem:[%s927 + $0x38] sm:$0xff] %v942
                  %s944 = sadd.s32 1, %s925
                  %p945 = scmp.ge.s32.totalorder %s944, %s918
                  %s946 = scalar_select %p945, 0, %s944
                  %s947 = smul.u32 %s946, 64
                  %s948 = smul.u32 %s946, 64
                  %s949 = scalar_lea.vmem %s837, %s947 [#allocation2]
                  %s950 = scalar_lea.vmem %s848, %s948
                $region87: #{baseline_model_forward.1} parent=81 // loop_footer
                  %s922 = sadd.s32 %s920, 1
                $region88: #{baseline_model_forward.1} parent=81 // loop_footer_branch
                  %919 = sbr.rel target = $region84
                $region89: #{baseline_model_forward.1} parent=81 // loop_exit
                  _
                %s951 = sshrl.u32 %s844, 3
                %s952 = sand.u32 %s844, 7
                %s953 = smul.u32 %s951, 8
                %s954 = smul.u32 8, %s953
                %s955 = scalar_lea.vmem %s837, %s954 [#allocation2]
                %s956 = smul.u32 8, %s953
                %s957 = scalar_lea.vmem %s848, %s956
                // While loop
                $region90: #{baseline_model_forward.1} parent=81 // loop_pre_header
                  _
                $region91: #{baseline_model_forward.1} parent=81 // loop_header
                  %s959 = sphi 0, %s961
                  %p960 = scmp.ge.s32.totalorder %s959, %s952
                  %s964 = sphi 0, %s971
                  %s965 = sphi %s955, %s974
                  %s966 = sphi %s957, %s975
                $region92: #{baseline_model_forward.1} parent=81 // loop_header_branch
                  %963 = sbr.rel (%p960) target = $region96
                $region93: #{baseline_model_forward.1} parent=81 // loop_body
                  %v967 = vld [vmem:[%s965] sm:$0xff]
                  %968 = vst [vmem:[%s966] sm:$0xff] %v967
                  %s969 = sadd.s32 1, %s964
                  %p970 = scmp.ge.s32.totalorder %s969, %s952
                  %s971 = scalar_select %p970, 0, %s969
                  %s972 = smul.u32 %s971, 8
                  %s973 = smul.u32 %s971, 8
                  %s974 = scalar_lea.vmem %s955, %s972 [#allocation2]
                  %s975 = scalar_lea.vmem %s957, %s973
                $region94: #{baseline_model_forward.1} parent=81 // loop_footer
                  %s961 = sadd.s32 %s959, 1
                $region95: #{baseline_model_forward.1} parent=81 // loop_footer_branch
                  %958 = sbr.rel target = $region91
                $region96: #{baseline_model_forward.1} parent=81 // loop_exit
                  _
              $region82: #{baseline_model_forward.1} parent=59 // pred_fallthru
                _
              // Predicated region
              $region97: #{baseline_model_forward.1} parent=59 // pred_check
                _
              $region98: #{baseline_model_forward.1} parent=59 // pred_check_branch
                %977 = sbr.rel target = $region100
              $region99: #{baseline_model_forward.1} parent=59 // pred_region
                _
              $region100: #{baseline_model_forward.1} parent=59 // pred_fallthru
                _
            $region60: #{baseline_model_forward.1} parent=55 // pred_fallthru
              _
            // Predicated region
            $region61: #{baseline_model_forward.1} parent=55 // pred_check
              _
            $region62: #{baseline_model_forward.1} parent=55 // pred_check_branch
              %855 = sbr.rel target = $region64
            $region63: #{baseline_model_forward.1} parent=55 // pred_region
              %s857 = ssub.s32 256, 1
              %s858 = sshrl.u32 %s844, 3
              // While loop
              $region65: #{baseline_model_forward.1} parent=63 // loop_pre_header
                _
              $region66: #{baseline_model_forward.1} parent=63 // loop_header
                %s860 = sphi 0, %s862
                %p861 = scmp.ge.s32.totalorder %s860, %s858
                %s865 = sphi 0, %s886
                %s866 = sphi %s837, %s889
                %s867 = sphi %s848, %s890
              $region67: #{baseline_model_forward.1} parent=63 // loop_header_branch
                %864 = sbr.rel (%p861) target = $region71
              $region68: #{baseline_model_forward.1} parent=63 // loop_body
                %v868 = vld [vmem:[%s866] sm:%s857]
                %869 = vst [vmem:[%s867] sm:%s857] %v868
                %v870 = vld [vmem:[%s866 + $0x8] sm:%s857]
                %871 = vst [vmem:[%s867 + $0x8] sm:%s857] %v870
                %v872 = vld [vmem:[%s866 + $0x10] sm:%s857]
                %873 = vst [vmem:[%s867 + $0x10] sm:%s857] %v872
                %v874 = vld [vmem:[%s866 + $0x18] sm:%s857]
                %875 = vst [vmem:[%s867 + $0x18] sm:%s857] %v874
                %v876 = vld [vmem:[%s866 + $0x20] sm:%s857]
                %877 = vst [vmem:[%s867 + $0x20] sm:%s857] %v876
                %v878 = vld [vmem:[%s866 + $0x28] sm:%s857]
                %879 = vst [vmem:[%s867 + $0x28] sm:%s857] %v878
                %v880 = vld [vmem:[%s866 + $0x30] sm:%s857]
                %881 = vst [vmem:[%s867 + $0x30] sm:%s857] %v880
                %v882 = vld [vmem:[%s866 + $0x38] sm:%s857]
                %883 = vst [vmem:[%s867 + $0x38] sm:%s857] %v882
                %s884 = sadd.s32 1, %s865
                %p885 = scmp.ge.s32.totalorder %s884, %s858
                %s886 = scalar_select %p885, 0, %s884
                %s887 = smul.u32 %s886, 64
                %s888 = smul.u32 %s886, 64
                %s889 = scalar_lea.vmem %s837, %s887 [#allocation2]
                %s890 = scalar_lea.vmem %s848, %s888
              $region69: #{baseline_model_forward.1} parent=63 // loop_footer
                %s862 = sadd.s32 %s860, 1
              $region70: #{baseline_model_forward.1} parent=63 // loop_footer_branch
                %859 = sbr.rel target = $region66
              $region71: #{baseline_model_forward.1} parent=63 // loop_exit
                _
              %s891 = sshrl.u32 %s844, 3
              %s892 = sand.u32 %s844, 7
              %s893 = smul.u32 %s891, 8
              %s894 = smul.u32 8, %s893
              %s895 = scalar_lea.vmem %s837, %s894 [#allocation2]
              %s896 = smul.u32 8, %s893
              %s897 = scalar_lea.vmem %s848, %s896
              // While loop
              $region72: #{baseline_model_forward.1} parent=63 // loop_pre_header
                _
              $region73: #{baseline_model_forward.1} parent=63 // loop_header
                %s899 = sphi 0, %s901
                %p900 = scmp.ge.s32.totalorder %s899, %s892
                %s904 = sphi 0, %s911
                %s905 = sphi %s895, %s914
                %s906 = sphi %s897, %s915
              $region74: #{baseline_model_forward.1} parent=63 // loop_header_branch
                %903 = sbr.rel (%p900) target = $region78
              $region75: #{baseline_model_forward.1} parent=63 // loop_body
                %v907 = vld [vmem:[%s905] sm:%s857]
                %908 = vst [vmem:[%s906] sm:%s857] %v907
                %s909 = sadd.s32 1, %s904
                %p910 = scmp.ge.s32.totalorder %s909, %s892
                %s911 = scalar_select %p910, 0, %s909
                %s912 = smul.u32 %s911, 8
                %s913 = smul.u32 %s911, 8
                %s914 = scalar_lea.vmem %s895, %s912 [#allocation2]
                %s915 = scalar_lea.vmem %s897, %s913
              $region76: #{baseline_model_forward.1} parent=63 // loop_footer
                %s901 = sadd.s32 %s899, 1
              $region77: #{baseline_model_forward.1} parent=63 // loop_footer_branch
                %898 = sbr.rel target = $region73
              $region78: #{baseline_model_forward.1} parent=63 // loop_exit
                _
            $region64: #{baseline_model_forward.1} parent=55 // pred_fallthru
              _
          $region56: #{baseline_model_forward.1} parent=51 // pred_fallthru
            _
          %978 = vnop
        $region52: #{baseline_model_forward.1} parent=47 // pred_fallthru
          _
      $region48: #{baseline_model_forward.1} parent=5 // pred_fallthru
        _
      %p979 = scmp.le.s32.totalorder 2, %s13
      // Predicated region
      $region101: #{baseline_model_forward.1} parent=5 // pred_check
        %p980 = pneg %p979
      $region102: #{baseline_model_forward.1} parent=5 // pred_check_branch
        %982 = sbr.rel (%p980) target = $region104
      $region103: #{baseline_model_forward.1} parent=5 // pred_region
        %s983 = ssub.s32 %s13, 2
        // Predicated region
        $region105: #{baseline_model_forward.1} parent=103 // pred_check
          %p984 = pneg %p194
        $region106: #{baseline_model_forward.1} parent=103 // pred_check_branch
          %986 = sbr.rel (%p984) target = $region108
        $region107: #{baseline_model_forward.1} parent=103 // pred_region
          %s987 = sand.u32 %s179, 1
          %s988 = sand.u32 %s179, 1
          %s989 = smul.addr %s988, 64
          %s990 = scalar_lea.vmem [#allocation2], %s989
        $region108: #{baseline_model_forward.1} parent=103 // pred_fallthru
          _
      $region104: #{baseline_model_forward.1} parent=5 // pred_fallthru
        _
    $region6: #{baseline_model_forward.1} parent=1 // loop_footer
      %s17 = sadd.s32 1, %s13
    $region7: #{baseline_model_forward.1} parent=1 // loop_footer_branch
      %12 = sbr.rel target = $region3
    $region8: #{baseline_model_forward.1} parent=1 // loop_exit
      _

</llo_original>
